<compile_context>
chip_gen: v7x
topology: tpu7x:2x2x1
jax: 0.10.0
libtpu: 0.0.40
codegen_flags: <defaults>
</compile_context>

<pallas_src>
import jax
import jax.numpy as jnp
from jax import lax
from jax.experimental import pallas as pl
from jax.experimental.pallas import tpu as pltpu


_LANE = 128
_SUBLANE = 8
# Budget for the (lane-padded, double-buffered) streamed blocks per grid step.
_BLOCK_BUDGET_BYTES = 26 * 1024 * 1024
# Scoped VMEM limit handed to Mosaic: above v5e's 16 MiB / v6e-v7x's 32 MiB
# defaults, comfortably below v7x's 64 MiB physical VMEM.
_VMEM_LIMIT_BYTES = 48 * 1024 * 1024
# Target positions processed per grid step (amortizes the ~0.35 us step cost).
_TARGET_POS_PER_STEP = 16384
# Max batch rows per block (the kernel statically unrolls over this dim).
_MAX_BATCH_TILE = 16


def _round_up(x, m):
    return ((x + m - 1) // m) * m


def _padded_block_bytes(bt, tile_s, E, C, itemsize):
    # VMEM stores the last dim padded to 128 lanes and the second-to-last dim
    # padded to 8 sublanes; the pipeline double-buffers every streamed block.
    x_blk = bt * _round_up(tile_s, _SUBLANE) * _round_up(E, _LANE) * itemsize
    o_blk = bt * _round_up(C, _SUBLANE) * _round_up(tile_s, _LANE) * itemsize
    return 2 * (x_blk + o_blk)


def _choose_tiles(B, S, E, C, itemsize):
    """Pick (batch_tile, seq_tile) for grid (cdiv(B, bt), cdiv(S, tile_s))."""
    # 1) Sequence tile: the whole sequence if it fits the target step size,
    #    otherwise a multiple of 128 at the target size (partial last tile is
    #    handled by masked output stores).
    tile_s = S if S <= _TARGET_POS_PER_STEP else _TARGET_POS_PER_STEP

    # 2) Batch tile: only when one block already covers the whole (small)
    #    sequence -- amortizes per-step overhead over several batch rows.
    if tile_s == S and S < _TARGET_POS_PER_STEP:
        bt = min(B, max(1, _TARGET_POS_PER_STEP // max(S, 1)), _MAX_BATCH_TILE)
    else:
        bt = 1

    # 3) Shrink until the padded, double-buffered blocks fit the VMEM budget.
    while _padded_block_bytes(bt, tile_s, E, C, itemsize) > _BLOCK_BUDGET_BYTES:
        if bt > 1:
            bt = max(1, bt // 2)
        elif tile_s > _LANE:
            tile_s = max(_LANE, (tile_s // 2 // _LANE) * _LANE)
        else:
            break

    # 4) Megacore: guarantee >= 2 blocks along the parallel axes when possible
    #    so both of v7x's TensorCores get work (no-op on single-TC v5e/v6e).
    if pl.cdiv(B, bt) * pl.cdiv(S, tile_s) < 2:
        if B >= 2 and bt > 1:
            bt = pl.cdiv(B, 2)
        elif S > _LANE and tile_s >= S:
            tile_s = _LANE * pl.cdiv(pl.cdiv(S, 2), _LANE)

    return bt, tile_s


def conv1x1_relu_kernel(x_ref, w_ref, b_ref, o_ref):
    # x_ref: (Bt, TILE_S, E)   streamed activations (pre-transpose layout)
    # w_ref: (C, E)            Conv1d k=1 weight, VMEM-resident across the grid
    # b_ref: (C, 1)            bias, VMEM-resident
    # o_ref: (Bt, C, TILE_S)   lane-dense output tile in PyTorch's NCL layout
    w = w_ref[...]
    b = b_ref[...]
    for bi in range(x_ref.shape[0]):  # static, small (<= _MAX_BATCH_TILE)
        # Contract the E (lane) dim of both operands: (C,E) . (TILE_S,E)^T ->
        # (C, TILE_S) with f32 accumulation on the MXU.  The alternative
        # (x @ w^T followed by transposing the (TILE_S, C) result) pushes the
        # same element count through the XLU, so the direct form is kept and
        # the store stays lane-dense.
        y = lax.dot_general(
            w, x_ref[bi],
            dimension_numbers=(((1,), (1,)), ((), ())),
            preferred_element_type=jnp.float32,
        )
        o_ref[bi] = jnp.maximum(y + b, 0.0).astype(o_ref.dtype)


def conv_encoder_forward(x, conv_weight, conv_bias):
    """Replicates Conv_Encoder.forward.

    x:           (B, S, E)  -- the tensor PyTorch gets before x.transpose(1, 2)
    conv_weight: (C, E, 1)  -- torch.nn.Conv1d weight layout (out_ch, in_ch, k=1)
    conv_bias:   (C,)
    returns:     relu(conv1d(x.transpose(1, 2))).squeeze()   (squeeze of (B, C, S))
    """
    B, S, E = x.shape
    C = conv_weight.shape[0]

    w = conv_weight[:, :, 0].astype(x.dtype)        # (C, E) -- no transpose needed
    b = conv_bias.reshape(C, 1).astype(jnp.float32)  # (C, 1), f32 epilogue

    itemsize = jnp.dtype(x.dtype).itemsize
    bt, tile_s = _choose_tiles(B, S, E, C, itemsize)
    grid = (pl.cdiv(B, bt), pl.cdiv(S, tile_s))

    cost = pl.CostEstimate(
        flops=2 * B * S * E * C,
        bytes_accessed=itemsize * (B * S * E + B * C * S) + 4 * (C * E + C),
        transcendentals=0,
    )

    out = pl.pallas_call(
        conv1x1_relu_kernel,
        out_shape=jax.ShapeDtypeStruct((B, C, S), x.dtype),
        grid=grid,
        in_specs=[
            # x tile: (Bt, tile_s, E); partial edge tiles handled by masking.
            pl.BlockSpec((bt, tile_s, E), lambda bi, si: (bi, si, 0)),
            # weight / bias stay resident in VMEM across all grid steps.
            pl.BlockSpec((C, E), lambda bi, si: (0, 0)),
            pl.BlockSpec((C, 1), lambda bi, si: (0, 0)),
        ],
        # Write directly in NCL (B, C, S): lane dim = sequence tile.
        out_specs=pl.BlockSpec((bt, C, tile_s), lambda bi, si: (bi, 0, si)),
        compiler_params=pltpu.CompilerParams(
            dimension_semantics=("parallel", "parallel"),
            vmem_limit_bytes=_VMEM_LIMIT_BYTES,
        ),
        cost_estimate=cost,
    )(x, w, b)

    return jnp.squeeze(out)  # matches .squeeze() in forward


if __name__ == "__main__":
    # Small shapes consistent with the module's forward:
    batch = 2
    sentence_len = 8
    embedding_dim = 32
    encoder_dim = 16

    key = jax.random.PRNGKey(0)
    kx, kw, kb = jax.random.split(key, 3)

    x = jax.random.normal(kx, (batch, sentence_len, embedding_dim), dtype=jnp.float32)
    # Deterministic synthetic parameters (torch Conv1d weight layout: (out, in, k))
    conv_weight = jax.random.normal(
        kw, (encoder_dim, embedding_dim, 1), dtype=jnp.float32
    ) * (1.0 / jnp.sqrt(embedding_dim))
    conv_bias = jax.random.normal(kb, (encoder_dim,), dtype=jnp.float32) * 0.01

    out = jax.block_until_ready(conv_encoder_forward(x, conv_weight, conv_bias))

    # Cross-check against a plain-JAX reference of the same math.
    ref = jnp.maximum(
        jnp.einsum("bse,ce->bcs", x, conv_weight[:, :, 0]) + conv_bias[None, :, None],
        0.0,
    )
    ref = jnp.squeeze(ref)
    assert out.shape == ref.shape, (out.shape, ref.shape)
    assert jnp.allclose(out, ref, atol=1e-5, rtol=1e-5)

    print("KERNEL_OK")
</pallas_src>

<mosaic_0001>
module attributes {stable_mosaic.version = 11 : i64} {
  func.func @conv1x1_relu_kernel(%arg0: i32, %arg1: i32, %arg2: memref<1x8x32xf32, #tpu.memory_space<vmem>>, %arg3: memref<16x32xf32, #tpu.memory_space<vmem>>, %arg4: memref<16x1xf32, #tpu.memory_space<vmem>>, %arg5: memref<1x16x8xf32, #tpu.memory_space<vmem>>) attributes {dimension_semantics = [#tpu.dimension_semantics<parallel>, #tpu.dimension_semantics<parallel>], iteration_bounds = array<i64: 2, 1>, scalar_prefetch = 0 : i64, scratch_operands = 0 : i64, tpu.core_type = #tpu.core_type<tc>, window_params = [{transform_indices = @transform_0, window_bounds = array<i64: 1, 8, 32>}, {pipeline_mode = #tpu.pipeline_mode<synchronous>, transform_indices = @transform_1, window_bounds = array<i64: 16, 32>}, {pipeline_mode = #tpu.pipeline_mode<synchronous>, transform_indices = @transform_2, window_bounds = array<i64: 16, 1>}, {transform_indices = @transform_3, window_bounds = array<i64: 1, 16, 8>}]} {
    %c0 = arith.constant 0 : index
    %c0_0 = arith.constant 0 : index
    %0 = vector.load %arg3[%c0, %c0_0] : memref<16x32xf32, #tpu.memory_space<vmem>>, vector<16x32xf32>
    %c0_1 = arith.constant 0 : index
    %c0_2 = arith.constant 0 : index
    %1 = vector.load %arg4[%c0_1, %c0_2] : memref<16x1xf32, #tpu.memory_space<vmem>>, vector<16x1xf32>
    %c0_3 = arith.constant 0 : index
    %c0_4 = arith.constant 0 : index
    %c0_5 = arith.constant 0 : index
    %2 = vector.load %arg2[%c0_3, %c0_4, %c0_5] : memref<1x8x32xf32, #tpu.memory_space<vmem>>, vector<1x8x32xf32>
    %3 = vector.shape_cast %2 : vector<1x8x32xf32> to vector<8x32xf32>
    %cst = arith.constant dense<0.000000e+00> : vector<16x8xf32>
    %4 = tpu.matmul %0, %3, %cst {dimension_numbers = #tpu.dot_dimension_numbers<[1], [1], [0], [0], [0, 0, 1, 0], [], []>} : vector<16x32xf32>, vector<8x32xf32>, vector<16x8xf32> -> vector<16x8xf32>
    %5 = vector.broadcast %1 : vector<16x1xf32> to vector<16x8xf32>
    %6 = arith.addf %4, %5 : vector<16x8xf32>
    %cst_6 = arith.constant 0.000000e+00 : f32
    %7 = vector.broadcast %cst_6 : f32 to vector<16x8xf32>
    %8 = arith.maximumf %6, %7 : vector<16x8xf32>
    %c0_7 = arith.constant 0 : index
    %c0_8 = arith.constant 0 : index
    %c0_9 = arith.constant 0 : index
    %9 = vector.load %arg5[%c0_7, %c0_8, %c0_9] : memref<1x16x8xf32, #tpu.memory_space<vmem>>, vector<1x16x8xf32>
    %10 = vector.shape_cast %9 : vector<1x16x8xf32> to vector<16x8xf32>
    %11 = vector.shape_cast %8 : vector<16x8xf32> to vector<1x16x8xf32>
    tpu.vector_store %arg5[%c0_7, %c0_8, %c0_9], %11 {strides = array<i32>} : memref<1x16x8xf32, #tpu.memory_space<vmem>>, vector<1x16x8xf32>,
    return
  }
  func.func @transform_0(%arg0: i32, %arg1: i32) -> (i32, i32, i32) {
    %c0_i32 = arith.constant 0 : i32
    %c0_i32_0 = arith.constant 0 : i32
    return %arg0, %arg1, %c0_i32 : i32, i32, i32
  }
  func.func @transform_1(%arg0: i32, %arg1: i32) -> (i32, i32) {
    %c0_i32 = arith.constant 0 : i32
    %c0_i32_0 = arith.constant 0 : i32
    %c0_i32_1 = arith.constant 0 : i32
    return %c0_i32, %c0_i32_0 : i32, i32
  }
  func.func @transform_2(%arg0: i32, %arg1: i32) -> (i32, i32) {
    %c0_i32 = arith.constant 0 : i32
    %c0_i32_0 = arith.constant 0 : i32
    %c0_i32_1 = arith.constant 0 : i32
    return %c0_i32, %c0_i32_0 : i32, i32
  }
  func.func @transform_3(%arg0: i32, %arg1: i32) -> (i32, i32, i32) {
    %c0_i32 = arith.constant 0 : i32
    %c0_i32_0 = arith.constant 0 : i32
    return %arg0, %c0_i32, %arg1 : i32, i32, i32
  }
}

</mosaic_0001>

<llo_original>
// kernel: tpu_custom_call.1
$region0: #{tpu_custom_call.1}
  #allocation0 [shape = 'u32[]', space=smem, size = 0x4, offset = 0x4, fixed_abs, tag = 'smem constant byte address 0x4 - core index']
  #allocation1 [shape = 'u32[144,128]{1,0:T(1,128)}', space=vmem, size = 0x12000, scoped, tag = 'internal scratch']
  %s0 = inlined_call_operand.vmem [shape: f32[2,8,32], index: 0, kind: input, shape index: {}]
  %s1 = inlined_call_operand.hbm [shape: f32[16,32], index: 1, kind: input, shape index: {}]
  %s2 = inlined_call_operand.vmem [shape: f32[16,1], index: 2, kind: input, shape index: {}]
  %s3 = inlined_call_operand.vmem [shape: f32[2,16,8], index: 3, kind: output, shape index: {}]
  %s4 = sld [smem:[#allocation0]]
  $region49: #{tpu_custom_call.1} parent=0
    _
  %s6 = ssub.s32 1, %s4
  %s7 = scalar_select 0, %s6, %s4
  $region1: #{tpu_custom_call.1} parent=0
    #allocation2 [shape = 'u8[8192]{0}', space=vmem, size = 0x2000, scoped, tag = 'input window, operand 1, single buffered']
    #allocation3 [shape = 's32[2]{0}', space=sflag, size = 0x8, scoped, tag = 'scoped memory for tpu_custom_call.1']
    %8 = vsyncpa [#allocation3], 0
    loop: start=0, step=1, limit=4
    $region2: #{tpu_custom_call.1} parent=1 // loop_pre_header
      _
    $region3: #{tpu_custom_call.1} parent=1 // loop_header
      %s10 = sphi 0, %s14
      %p11 = scmp.ge.s32.totalorder %s10, 4
      %s17 = sphi 0, %s29
      %s18 = sphi 0, %s25
      %s19 = sphi 0, %s17
      %s20 = sphi 0, %s18
      %s21 = sphi 0, %s19
      %s22 = sphi 0, %s20
      %s34 = sphi 0, %s36
      %s37 = sphi 0, %s34
      %s38 = sphi 0, %s37
      %s54 = sphi 0, %s38
      %s58 = sphi 0, %s58
      %s60 = sphi 0, %s58
      %s61 = sphi 0, %s60
      %s75 = sphi 0, %s61
      %s79 = sphi 0, %s79
      %s81 = sphi 0, %s79
      %s82 = sphi 0, %s81
      %s96 = sphi 0, %s82
      %s104 = sphi 0, %s106
      %s107 = sphi 0, %s104
      %s108 = sphi 0, %s107
      %s124 = sphi 0, %s108
    $region4: #{tpu_custom_call.1} parent=1 // loop_header_branch
      %13 = sbr.rel (%p11) target = $region8
    $region5: #{tpu_custom_call.1} parent=1 // loop_body
      %s15 = ssub.s32 %s10, 1
      %s16 = ssub.s32 %s10, 2
      %s23 = sadd.s32 1, %s18
      %p24 = scmp.ge.s32.totalorder %s23, 1
      %s25 = scalar_select %p24, 0, %s23
      %s26 = sadd.s32 1, %s17
      %s27 = scalar_select %p24, %s26, %s17
      %p28 = scmp.ge.s32.totalorder %s27, 2
      %s29 = scalar_select %p28, 0, %s27
      %s30 = ssub.s32 %s17, %s29
      %s31 = ssub.s32 %s18, %s25
      %s32 = sor.u32 %s30, %s31
      %p33 = scmp.eq.s32.totalorder %s32, 0
      %s35 = sadd.s32 %s34, 1
      %s36 = scalar_select %p33, %s34, %s35
      %p39 = pneg %p33
      %p40 = scmp.eq.s32.totalorder %s10, 1
      %p41 = por %p39, %p40
      %p42 = scmp.ne.s32.totalorder %s34, %s37
      %p43 = scmp.eq.s32.totalorder %s10, 0
      %p44 = por %p42, %p43
      %p45 = scmp.ne.s32.totalorder %s34, %s37
      %p46 = scmp.eq.s32.totalorder %s15, 1
      %p47 = por %p45, %p46
      %p48 = scmp.ne.s32.totalorder %s37, %s38
      %p49 = scmp.eq.s32.totalorder %s15, 0
      %p50 = por %p48, %p49
      %p51 = scmp.ne.s32.totalorder %s37, %s38
      %p52 = scmp.eq.s32.totalorder %s16, 1
      %p53 = por %p51, %p52
      %p55 = scmp.ne.s32.totalorder %s38, %s54
      %p56 = scmp.eq.s32.totalorder %s16, 0
      %p57 = por %p55, %p56
      %s59 = sadd.s32 %s58, 1
      %p62 = scmp.eq.s32.totalorder %s10, 1
      %p63 = scmp.ne.s32.totalorder %s58, %s60
      %p64 = scmp.eq.s32.totalorder %s10, 0
      %p65 = por %p63, %p64
      %p66 = scmp.ne.s32.totalorder %s58, %s60
      %p67 = scmp.eq.s32.totalorder %s15, 1
      %p68 = por %p66, %p67
      %p69 = scmp.ne.s32.totalorder %s60, %s61
      %p70 = scmp.eq.s32.totalorder %s15, 0
      %p71 = por %p69, %p70
      %p72 = scmp.ne.s32.totalorder %s60, %s61
      %p73 = scmp.eq.s32.totalorder %s16, 1
      %p74 = por %p72, %p73
      %p76 = scmp.ne.s32.totalorder %s61, %s75
      %p77 = scmp.eq.s32.totalorder %s16, 0
      %p78 = por %p76, %p77
      %s80 = sadd.s32 %s79, 1
      %p83 = scmp.eq.s32.totalorder %s10, 1
      %p84 = scmp.ne.s32.totalorder %s79, %s81
      %p85 = scmp.eq.s32.totalorder %s10, 0
      %p86 = por %p84, %p85
      %p87 = scmp.ne.s32.totalorder %s79, %s81
      %p88 = scmp.eq.s32.totalorder %s15, 1
      %p89 = por %p87, %p88
      %p90 = scmp.ne.s32.totalorder %s81, %s82
      %p91 = scmp.eq.s32.totalorder %s15, 0
      %p92 = por %p90, %p91
      %p93 = scmp.ne.s32.totalorder %s81, %s82
      %p94 = scmp.eq.s32.totalorder %s16, 1
      %p95 = por %p93, %p94
      %p97 = scmp.ne.s32.totalorder %s82, %s96
      %p98 = scmp.eq.s32.totalorder %s16, 0
      %p99 = por %p97, %p98
      %s100 = ssub.s32 %s17, %s29
      %s101 = ssub.s32 %s18, %s25
      %s102 = sor.u32 %s100, %s101
      %p103 = scmp.eq.s32.totalorder %s102, 0
      %s105 = sadd.s32 %s104, 1
      %s106 = scalar_select %p103, %s104, %s105
      %p109 = pneg %p103
      %p110 = scmp.eq.s32.totalorder %s10, 1
      %p111 = por %p109, %p110
      %p112 = scmp.ne.s32.totalorder %s104, %s107
      %p113 = scmp.eq.s32.totalorder %s10, 0
      %p114 = por %p112, %p113
      %p115 = scmp.ne.s32.totalorder %s104, %s107
      %p116 = scmp.eq.s32.totalorder %s15, 1
      %p117 = por %p115, %p116
      %p118 = scmp.ne.s32.totalorder %s107, %s108
      %p119 = scmp.eq.s32.totalorder %s15, 0
      %p120 = por %p118, %p119
      %p121 = scmp.ne.s32.totalorder %s107, %s108
      %p122 = scmp.eq.s32.totalorder %s16, 1
      %p123 = por %p121, %p122
      %p125 = scmp.ne.s32.totalorder %s108, %s124
      %p126 = scmp.eq.s32.totalorder %s16, 0
      %p127 = por %p125, %p126
      %p128 = scmp.le.s32.totalorder 1, %s10
      %p129 = scmp.lt.s32.totalorder %s10, 3
      %p130 = pnand %p128, %p129
      %p131 = pneg %p130
      // Predicated region
      $region9: #{tpu_custom_call.1} parent=5 // pred_check
        _
      $region10: #{tpu_custom_call.1} parent=5 // pred_check_branch
        %133 = sbr.rel (%p130) target = $region12
      $region11: #{tpu_custom_call.1} parent=5 // pred_region
        %s134 = ssub.s32 %s10, 1
        // Predicated region
        $region13: #{tpu_custom_call.1} parent=11 // pred_check
          %p135 = pneg %p71
        $region14: #{tpu_custom_call.1} parent=11 // pred_check_branch
          %137 = sbr.rel (%p135) target = $region16
        $region15: #{tpu_custom_call.1} parent=11 // pred_region
          %s139 = ssub.s32 256, 256
          %140 = vsyncadd [#allocation3], %s139
          %s141 = sshll.u32 [#allocation2], 4
          %s142 = int_to_ptr.vmem [resolvable:$true] %s141
          %147 = dma.hbm_to_vmem [thread:$0]  %s1, 256, %s142, [#allocation3], 128, 128, 8
        $region16: #{tpu_custom_call.1} parent=11 // pred_fallthru
          _
        // Predicated region
        $region17: #{tpu_custom_call.1} parent=11 // pred_check
          %p148 = pneg %p92
        $region18: #{tpu_custom_call.1} parent=11 // pred_check_branch
          %150 = sbr.rel (%p148) target = $region20
        $region19: #{tpu_custom_call.1} parent=11 // pred_region
          _
        $region20: #{tpu_custom_call.1} parent=11 // pred_fallthru
          _
      $region12: #{tpu_custom_call.1} parent=5 // pred_fallthru
        _
      %p151 = scmp.lt.s32.totalorder %s10, 2
      // Predicated region
      $region21: #{tpu_custom_call.1} parent=5 // pred_check
        %p152 = pneg %p151
      $region22: #{tpu_custom_call.1} parent=5 // pred_check_branch
        %154 = sbr.rel (%p152) target = $region24
      $region23: #{tpu_custom_call.1} parent=5 // pred_region
        // Predicated region
        $region25: #{tpu_custom_call.1} parent=23 // pred_check
          %p155 = pneg %p44
        $region26: #{tpu_custom_call.1} parent=23 // pred_check_branch
          %157 = sbr.rel (%p155) target = $region28
        $region27: #{tpu_custom_call.1} parent=23 // pred_region
          %p158 = scmp.lt.s32.totalorder %s17, 1
          %s159 = scalar_select %p158, %s17, 1
          %p160 = scmp.lt.s32.totalorder %s18, 0
          %s161 = scalar_select %p160, %s18, 0
          %s162 = sadd.s32 %s161, %s159
          %s163 = smul.addr %s162, 8
          %s164 = scalar_lea.vmem %s0, %s163
        $region28: #{tpu_custom_call.1} parent=23 // pred_fallthru
          _
      $region24: #{tpu_custom_call.1} parent=5 // pred_fallthru
        _
      %p165 = scmp.le.s32.totalorder 1, %s10
      %p166 = scmp.lt.s32.totalorder %s10, 3
      %p167 = pnand %p165, %p166
      %p168 = pneg %p167
      // Predicated region
      $region29: #{tpu_custom_call.1} parent=5 // pred_check
        _
      $region30: #{tpu_custom_call.1} parent=5 // pred_check_branch
        %170 = sbr.rel (%p167) target = $region32
      $region31: #{tpu_custom_call.1} parent=5 // pred_region
        %s171 = ssub.s32 %s10, 1
        // Predicated region
        $region33: #{tpu_custom_call.1} parent=31 // pred_check
          %p172 = pneg %p71
        $region34: #{tpu_custom_call.1} parent=31 // pred_check_branch
          %174 = sbr.rel (%p172) target = $region36
        $region35: #{tpu_custom_call.1} parent=31 // pred_region
          %175 = dma.done [#allocation3], 256
        $region36: #{tpu_custom_call.1} parent=31 // pred_fallthru
          _
        %p176 = scmp.lt.s32.totalorder %s19, 1
        %s177 = scalar_select %p176, %s19, 1
        %p178 = scmp.lt.s32.totalorder %s20, 0
        %s179 = scalar_select %p178, %s20, 0
        %s180 = sadd.s32 %s179, %s177
        %s181 = smul.addr %s180, 8
        %s182 = scalar_lea.vmem %s0, %s181
        %p183 = pneg %p50
        %p184 = pneg %p47
        %p185 = pneg %p71
        %p186 = pneg %p68
        %p187 = pneg %p92
        %p188 = pneg %p89
        %p189 = pneg %p120
        %p190 = pneg %p117
        %p191 = scmp.lt.s32.totalorder %s19, 1
        %s192 = scalar_select %p191, %s19, 1
        %p193 = scmp.lt.s32.totalorder %s20, 0
        %s194 = scalar_select %p193, %s20, 0
        %s195 = smul.addr %s192, 2
        %s196 = sadd.s32 %s194, %s195
        %s197 = smul.addr %s196, 8
        %s198 = scalar_lea.vmem %s3, %s197
        %p199 = scmp.lt.s32.totalorder %s19, 1
        %s200 = scalar_select %p199, %s19, 1
        %p201 = scmp.lt.s32.totalorder %s20, 0
        %s202 = scalar_select %p201, %s20, 0
        %s203 = sadd.s32 %s202, %s200
        %s204 = smul.addr %s203, 8
        %s205 = scalar_lea.vmem %s0, %s204
        %p206 = scmp.lt.s32.totalorder %s19, 1
        %s207 = scalar_select %p206, %s19, 1
        %p208 = scmp.lt.s32.totalorder %s20, 0
        %s209 = scalar_select %p208, %s20, 0
        %s210 = smul.addr %s207, 2
        %s211 = sadd.s32 %s209, %s210
        %s212 = smul.addr %s211, 8
        %s213 = scalar_lea.vmem %s3, %s212
        %v214 = vld [vmem:[#allocation2] sm:$0xff]
        %v215 = vld [vmem:[#allocation2 + $0x8] sm:$0xff]
        %v216 = vld [vmem:[%s2] sm:$0xff]
        %v217 = vld [vmem:[%s2 + $0x8] sm:$0xff]
        %v218 = vld [vmem:[%s205] sm:$0xff]
        %220 = vset.pattern.permute.xlu0 0
        %221 = vperm.xlu0 %220, %v216
        %v222 = vpop.permute.xlu0 %221
        %225 = vset.pattern.permute.xlu0 0
        %226 = vperm.xlu0 %225, %v217
        %v227 = vpop.permute.xlu0 %226
        %vm229 = vcmask 261120
        %v231 = vsel %vm229, %v214, 0
        %v234 = vsel %vm229, %v215, 0
        %v237 = vsel %vm229, %v218, 0
        %239 = vmatprep.subr.mxu0 0.0
        %240 = vmatpush1.xpose.msra.mxu0 %v237
        %241 = vmatprep.subr.mxu0 0.0
        %242 = vmatpush1.xpose.msra.mxu0 0.0
        %243 = vmatprep.subr.mxu0 0.0
        %244 = vmatpush1.xpose.msra.mxu0 0.0
        %245 = vmatprep.subr.mxu0 0.0
        %246 = vmatpush1.xpose.msra.mxu0 0.0
        %247 = vmatprep.subr.mxu0 0.0
        %248 = vmatpush1.xpose.msra.mxu0 0.0
        %249 = vmatprep.subr.mxu0 0.0
        %250 = vmatpush1.xpose.msra.mxu0 0.0
        %251 = vmatprep.subr.mxu0 0.0
        %252 = vmatpush1.xpose.msra.mxu0 0.0
        %253 = vmatprep.subr.mxu0 0.0
        %254 = vmatpush1.xpose.msra.mxu0 0.0
        %255 = vmatprep.subr.mxu0 0.0
        %256 = vmatpush1.xpose.msra.mxu0 0.0
        %257 = vmatprep.subr.mxu0 0.0
        %258 = vmatpush1.xpose.msra.mxu0 0.0
        %259 = vmatprep.subr.mxu0 0.0
        %260 = vmatpush1.xpose.msra.mxu0 0.0
        %261 = vmatprep.subr.mxu0 0.0
        %262 = vmatpush1.xpose.msra.mxu0 0.0
        %263 = vmatprep.subr.mxu0 0.0
        %264 = vmatpush1.xpose.msra.mxu0 0.0
        %265 = vmatprep.subr.mxu0 0.0
        %266 = vmatpush1.xpose.msra.mxu0 0.0
        %267 = vmatprep.subr.mxu0 0.0
        %268 = vmatpush1.xpose.msra.mxu0 0.0
        %269 = vmatprep.subr.mxu0 0.0
        %270 = vmatpush1.xpose.msra.mxu0 0.0
        %271 = vmatprep.subr.mxu0 0.0
        %272 = vmatpush1.xpose.msra.mxu0 0.0
        %273 = vmatprep.subr.mxu0 0.0
        %274 = vmatpush1.xpose.msra.mxu0 0.0
        %275 = vmatprep.subr.mxu0 0.0
        %276 = vmatpush1.xpose.msra.mxu0 0.0
        %277 = vmatprep.subr.mxu0 0.0
        %278 = vmatpush1.xpose.msra.mxu0 0.0
        %279 = vmatprep.subr.mxu0 0.0
        %280 = vmatpush1.xpose.msra.mxu0 0.0
        %281 = vmatprep.subr.mxu0 0.0
        %282 = vmatpush1.xpose.msra.mxu0 0.0
        %283 = vmatprep.subr.mxu0 0.0
        %284 = vmatpush1.xpose.msra.mxu0 0.0
        %285 = vmatprep.subr.mxu0 0.0
        %286 = vmatpush1.xpose.msra.mxu0 0.0
        %287 = vmatprep.subr.mxu0 0.0
        %288 = vmatpush1.xpose.msra.mxu0 0.0
        %289 = vmatprep.subr.mxu0 0.0
        %290 = vmatpush1.xpose.msra.mxu0 0.0
        %291 = vmatprep.subr.mxu0 0.0
        %292 = vmatpush1.xpose.msra.mxu0 0.0
        %293 = vmatprep.subr.mxu0 0.0
        %294 = vmatpush1.xpose.msra.mxu0 0.0
        %295 = vmatprep.subr.mxu0 0.0
        %296 = vmatpush1.xpose.msra.mxu0 0.0
        %297 = vmatprep.subr.mxu0 0.0
        %298 = vmatpush1.xpose.msra.mxu0 0.0
        %299 = vmatprep.subr.mxu0 0.0
        %300 = vmatpush1.xpose.msra.mxu0 0.0
        %301 = vmatprep.subr.mxu0 0.0
        %302 = vmatpush1.xpose.msra.mxu0 0.0
        %303 = vmatprep.mubr.f32.mxu0 0.0
        %304 = vmatmul.mubr.f32.gmra.mrb[0].mxu0 %v231
        %v305 = vpop.f32.mrb[0].mxu0
        %v306 = vadd.f32 %v222, %v305
        %v307 = vpop.f32.mrb[0].mxu0
        %308 = vmatprep.mubr.f32.mxu0 0.0
        %309 = vmatmul.mubr.f32.gmra.mrb[0].mxu0 %v234
        %v310 = vpop.f32.mrb[0].mxu0
        %v311 = vadd.f32 %v227, %v310
        %v312 = vpop.f32.mrb[0].mxu0
        %313 = vdwg.mxu0
        %v314 = vmax.f32 %v306, 0.0
        %v315 = vmax.f32 %v311, 0.0
        %vm316 = vcmask 64512
        %317 = vst.msk [vmem:[%s213] sm:$0xff] %vm316, %v314
        %318 = vst.msk [vmem:[%s213 + $0x8] sm:$0xff] %vm316, %v315
        %p319 = scmp.lt.s32.totalorder %s19, 1
        %s320 = scalar_select %p319, %s19, 1
        %p321 = scmp.lt.s32.totalorder %s20, 0
        %s322 = scalar_select %p321, %s20, 0
        %s323 = smul.addr %s320, 2
        %s324 = sadd.s32 %s322, %s323
        %s325 = smul.addr %s324, 8
        %s326 = scalar_lea.vmem %s3, %s325
        // Predicated region
        $region37: #{tpu_custom_call.1} parent=31 // pred_check
          %p327 = pneg %p117
        $region38: #{tpu_custom_call.1} parent=31 // pred_check_branch
          %329 = sbr.rel (%p327) target = $region40
        $region39: #{tpu_custom_call.1} parent=31 // pred_region
          _
        $region40: #{tpu_custom_call.1} parent=31 // pred_fallthru
          _
      $region32: #{tpu_custom_call.1} parent=5 // pred_fallthru
        _
      %p330 = scmp.le.s32.totalorder 2, %s10
      // Predicated region
      $region41: #{tpu_custom_call.1} parent=5 // pred_check
        %p331 = pneg %p330
      $region42: #{tpu_custom_call.1} parent=5 // pred_check_branch
        %333 = sbr.rel (%p331) target = $region44
      $region43: #{tpu_custom_call.1} parent=5 // pred_region
        %s334 = ssub.s32 %s10, 2
        // Predicated region
        $region45: #{tpu_custom_call.1} parent=43 // pred_check
          %p335 = pneg %p123
        $region46: #{tpu_custom_call.1} parent=43 // pred_check_branch
          %337 = sbr.rel (%p335) target = $region48
        $region47: #{tpu_custom_call.1} parent=43 // pred_region
          %p338 = scmp.lt.s32.totalorder %s21, 1
          %s339 = scalar_select %p338, %s21, 1
          %p340 = scmp.lt.s32.totalorder %s22, 0
          %s341 = scalar_select %p340, %s22, 0
          %s342 = smul.addr %s339, 2
          %s343 = sadd.s32 %s341, %s342
          %s344 = smul.addr %s343, 8
          %s345 = scalar_lea.vmem %s3, %s344
        $region48: #{tpu_custom_call.1} parent=43 // pred_fallthru
          _
      $region44: #{tpu_custom_call.1} parent=5 // pred_fallthru
        _
    $region6: #{tpu_custom_call.1} parent=1 // loop_footer
      %s14 = sadd.s32 1, %s10
    $region7: #{tpu_custom_call.1} parent=1 // loop_footer_branch
      %9 = sbr.rel target = $region3
    $region8: #{tpu_custom_call.1} parent=1 // loop_exit
      _
    %346 = vsyncpa [#allocation3], 1
    %s347 = scalar_lea.sflag [#allocation3], 1
    %348 = vsyncpa %s347, 1

</llo_original>
